<compile_context>
chip_gen: v6e
topology: v6e:2x2x1
jax: 0.10.0
libtpu: 0.0.40
codegen_flags: <defaults>
</compile_context>

<pallas_src>
import math

import jax
import jax.numpy as jnp
from jax.experimental import pallas as pl
from jax.experimental.pallas import tpu as pltpu


# ---------------------------------------------------------------------------
# Pallas kernel: grid = (task, k-tile).  Whole batch resident in VMEM.
# ---------------------------------------------------------------------------
def _processor_kernel(x_ref, kq_ref, wvo_ref, ybias_ref,
                      w1_ref, b1_ref, w2_ref, b2_ref,
                      out_ref, ctx_ref, acc_ref):
    k = pl.program_id(1)
    nk = pl.num_programs(1)
    B, P, D = x_ref.shape
    TK = wvo_ref.shape[1]                     # K-tile of the folded (D, D) weight
    wdt = wvo_ref.dtype                       # bf16 (default) or f32

    # ---- phase 1 (k == 0): attention scores / softmax / weighted context ----
    @pl.when(k == 0)
    def _():
        x = x_ref[...]                                            # (B, P, D) f32
        # scores[b, p] = x[b, p, :] . kq   (kq = Wk q^T * D**-0.5, folded in wrapper)
        # VPU multiply + XLU lane-reduce -> no 1-row MXU matmuls.
        s = jnp.sum(x * kq_ref[...], axis=-1)                     # (B, P)
        s = s - jnp.max(s, axis=-1, keepdims=True)
        e = jnp.exp(s)
        inv = pl.reciprocal(jnp.sum(e, axis=-1, keepdims=True), approx=True)
        attn = e * inv                                            # (B, P)
        # attention-weighted context; P is small -> VPU broadcast-mul + sublane reduce
        ctx_ref[...] = jnp.sum(attn[..., None] * x, axis=1)       # (B, D) f32
        acc_ref[...] = jnp.zeros_like(acc_ref)

    # ---- phase 2 (every k): K-tiled  ctx @ (Wv Wo)  with f32 accumulator ----
    if TK == D:                                                   # single K tile
        ctx_k = ctx_ref[...]
    else:                                                         # TK is a multiple of 128
        off = pl.multiple_of(k * TK, TK)
        ctx_k = ctx_ref[:, pl.ds(off, TK)]
    acc_ref[...] += jnp.dot(ctx_k.astype(wdt), wvo_ref[0],
                            preferred_element_type=jnp.float32)

    # ---- phase 3 (k == last): residual/bias + Head MLP + lane-dense store ----
    @pl.when(k == nk - 1)
    def _():
        # y = ctx @ (Wv Wo) + (bv Wo + bo + task_token)   (residual folded into bias)
        y = acc_ref[...] + ybias_ref[0]                           # (B, D) f32
        h = jnp.dot(y.astype(wdt), w1_ref[0],
                    preferred_element_type=jnp.float32) + b1_ref[0]
        # exact (erf) GELU to match nn.GELU(); dropout is the inference identity.
        h = 0.5 * h * (1.0 + jax.lax.erf(h * (1.0 / math.sqrt(2.0))))
        o = jnp.dot(h.astype(wdt), w2_ref[0],
                    preferred_element_type=jnp.float32) + b2_ref[0]
        out_ref[0] = o.astype(out_ref.dtype)                      # (B, OUT_PAD) lane-dense


# ---------------------------------------------------------------------------
# Wrapper: fold per-task constants, stack over tasks, single gridded call.
# ---------------------------------------------------------------------------
def _round_up(v, m):
    return -(-v // m) * m


def _pick_tk(D):
    """Largest 128-multiple K-tile that divides D, else the full D (toy sizes)."""
    for cand in (512, 256, 128):
        if D % cand == 0:
            return cand
    return D


def build_kernel_params(params, tasks, weights_dtype=jnp.bfloat16):
    """Fold Q/K and V/O projections per task and stack along a leading task axis.

    Folds are computed in f32 (HIGHEST precision); only the final stacked weight
    matrices (wvo, w1, w2) are cast to `weights_dtype`.  bf16 (default) halves the
    weight DMA bytes of this HBM-bound kernel; biases / folded vectors stay f32.
    """
    p0 = params[tasks[0]]
    D = p0["wq"].shape[0]
    scale = 1.0 / math.sqrt(D)
    hp = jax.lax.Precision.HIGHEST
    out_dims = {tk: int(params[tk]["w2"].shape[1]) for tk in tasks}
    out_pad = max(128, _round_up(max(out_dims.values()), 128))   # lane-dense output slab

    kq_l, wvo_l, ybias_l, w1_l, b1_l, w2_l, b2_l = [], [], [], [], [], [], []
    for tk in tasks:
        p = params[tk]
        q = jnp.dot(p["tok"], p["wq"], precision=hp) + p["bq"]               # (1, D)
        # bk . q is a constant shift of every score -> softmax invariant, dropped.
        kq_l.append(jnp.dot(q, p["wk"].T, precision=hp) * scale)             # (1, D)
        wvo_l.append(jnp.dot(p["wv"], p["wo"], precision=hp))                # (D, D)
        ybias_l.append(jnp.dot(p["bv"], p["wo"], precision=hp)
                       + p["bo"] + p["tok"])                                 # (1, D)
        w1_l.append(p["w1"]); b1_l.append(p["b1"])
        od = out_dims[tk]
        w2_l.append(jnp.zeros((p["w2"].shape[0], out_pad), jnp.float32)
                    .at[:, :od].set(p["w2"]))
        b2_l.append(jnp.zeros((1, out_pad), jnp.float32).at[:, :od].set(p["b2"]))

    kp = {
        "kq": jnp.stack(kq_l),                                    # (T, 1, D)      f32
        "wvo": jnp.stack(wvo_l).astype(weights_dtype),            # (T, D, D)      wdt
        "ybias": jnp.stack(ybias_l),                              # (T, 1, D)      f32
        "w1": jnp.stack(w1_l).astype(weights_dtype),              # (T, D, D//4)   wdt
        "b1": jnp.stack(b1_l),                                    # (T, 1, D//4)   f32
        "w2": jnp.stack(w2_l).astype(weights_dtype),              # (T, D//4, PAD) wdt
        "b2": jnp.stack(b2_l),                                    # (T, 1, PAD)    f32
    }
    return kp, out_dims, out_pad


def _processor_pallas(x, kp, out_pad):
    B, P, D = x.shape
    T, _, D4 = kp["w1"].shape
    wbytes = kp["wvo"].dtype.itemsize
    TK = _pick_tk(D)
    NK = D // TK

    def task_spec(shape):
        n = len(shape)
        return pl.BlockSpec((1,) + tuple(shape),
                            lambda t, k, n=n: (t,) + (0,) * n)

    def nb(shape, itemsize=4):
        return math.prod(shape) * itemsize

    # Explicit scoped-VMEM budget from actual block sizes (double-buffered inputs/output,
    # resident x, f32 scratch) + headroom; defaults (16/32 MiB) are far below physical.
    block_bytes = (
        nb((B, P, D))                                      # x (resident, single buffer)
        + 2 * (nb((1, 1, D))                               # kq
               + nb((1, TK, D), wbytes)                    # wvo K-tile
               + nb((1, 1, D))                              # ybias
               + nb((1, D, D4), wbytes)                     # w1
               + nb((1, 1, D4))                             # b1
               + nb((1, D4, out_pad), wbytes)               # w2
               + nb((1, 1, out_pad)))                       # b2
        + 2 * nb((1, B, out_pad))                            # output
        + 2 * nb((B, D)))                                    # ctx + acc scratch
    vmem_limit = max(16 << 20, min(int(block_bytes * 1.5) + (2 << 20), 56 << 20))

    flops = T * 2 * B * (2 * P * D + D * D + D * D4 + D4 * out_pad)
    trans = T * B * (P + 1 + D4)
    bytes_acc = (x.size * x.dtype.itemsize
                 + sum(int(v.size) * v.dtype.itemsize for v in kp.values())
                 + T * B * out_pad * 4)

    return pl.pallas_call(
        _processor_kernel,
        out_shape=jax.ShapeDtypeStruct((T, B, out_pad), jnp.float32),
        grid=(T, NK),
        in_specs=[
            pl.BlockSpec((B, P, D), lambda t, k: (0, 0, 0)),  # x: resident across t and k
            task_spec((1, D)),                                 # kq  (folded Q/K, pre-scaled)
            pl.BlockSpec((1, TK, D), lambda t, k: (t, k, 0)),  # wvo (Wv @ Wo), K-tiled
            task_spec((1, D)),                                 # ybias (bv@Wo + bo + tok)
            task_spec((D, D4)),                                # head fc1 weight
            task_spec((1, D4)),                                # head fc1 bias
            task_spec((D4, out_pad)),                          # head fc2 weight (lane-padded)
            task_spec((1, out_pad)),                           # head fc2 bias   (lane-padded)
        ],
        out_specs=pl.BlockSpec((1, B, out_pad), lambda t, k: (t, 0, 0)),
        scratch_shapes=[pltpu.VMEM((B, D), jnp.float32),       # attention-weighted context
                        pltpu.VMEM((B, D), jnp.float32)],      # f32 accumulator for ctx@wvo
        compiler_params=pltpu.CompilerParams(
            dimension_semantics=("parallel", "arbitrary"),     # tasks across TCs, k = reduction
            vmem_limit_bytes=vmem_limit),
        cost_estimate=pl.CostEstimate(flops=flops, transcendentals=trans,
                                      bytes_accessed=bytes_acc),
    )(x, kp["kq"], kp["wvo"], kp["ybias"], kp["w1"], kp["b1"], kp["w2"], kp["b2"])


def processor_forward(x, params, *, weights_dtype=jnp.bfloat16):
    """mask=None path of Processor.forward: dict of per-task outputs."""
    # TODO(synk): the mask!=None path groups rows by Python-level `.item()` counts and
    # gathers variable-length subsets — data-dependent shapes with no clean static-shape
    # Pallas equivalent; only the mask=None path is implemented.
    tasks = list(params.keys())
    kp, out_dims, out_pad = build_kernel_params(params, tasks, weights_dtype)
    out = _processor_pallas(x, kp, out_pad)                    # (T, B, OUT_PAD)
    # slice away the lane padding and mirror `self.output[tk](x).squeeze()`
    return {tk: jnp.squeeze(out[i, :, :out_dims[tk]]) for i, tk in enumerate(tasks)}


# ---------------------------------------------------------------------------
# Deterministic parameter construction (matches __init__ shapes; trunc_normal
# std=init_std for linear weights & task token, zeros for biases).
# ---------------------------------------------------------------------------
def trunc_normal(key, shape, std=0.02):
    return std * jax.random.truncated_normal(key, -2.0, 2.0, shape, jnp.float32)


def make_params(key, tasks, input_dim, output_dims, init_std=0.02):
    D = input_dim
    D4 = D // 4
    params = {}
    for tk in tasks:
        out_dim = output_dims[tk]
        keys = jax.random.split(key, 8)
        key = keys[-1]
        params[tk] = {
            "tok": trunc_normal(keys[0], (1, D), init_std),
            # CrossAttention projections (stored as (in, out): y = x @ W + b)
            "wq": trunc_normal(keys[1], (D, D), init_std), "bq": jnp.zeros((1, D), jnp.float32),
            "wk": trunc_normal(keys[2], (D, D), init_std), "bk": jnp.zeros((1, D), jnp.float32),
            "wv": trunc_normal(keys[3], (D, D), init_std), "bv": jnp.zeros((1, D), jnp.float32),
            "wo": trunc_normal(keys[4], (D, D), init_std), "bo": jnp.zeros((1, D), jnp.float32),
            # Head MLP
            "w1": trunc_normal(keys[5], (D, D4), init_std), "b1": jnp.zeros((1, D4), jnp.float32),
            "w2": trunc_normal(keys[6], (D4, out_dim), init_std),
            "b2": jnp.zeros((1, out_dim), jnp.float32),
        }
    return params


# ---------------------------------------------------------------------------
# Pure-JAX reference (un-fused math, as in the PyTorch module) for correctness.
# ---------------------------------------------------------------------------
def reference_task(x, p):
    hp = jax.lax.Precision.HIGHEST
    B, P, D = x.shape
    tok = p["tok"]
    q = jnp.dot(tok, p["wq"], precision=hp) + p["bq"]
    k = jnp.einsum("bpd,de->bpe", x, p["wk"], precision=hp) + p["bk"]
    v = jnp.einsum("bpd,de->bpe", x, p["wv"], precision=hp) + p["bv"]
    scores = jnp.einsum("bpd,d->bp", k, q[0], precision=hp) / math.sqrt(D)
    attn = jax.nn.softmax(scores, axis=-1)
    y = jnp.einsum("bp,bpd->bd", attn, v, precision=hp)
    y = jnp.dot(y, p["wo"], precision=hp) + p["bo"] + tok
    h = jax.nn.gelu(jnp.dot(y, p["w1"], precision=hp) + p["b1"], approximate=False)
    o = jnp.dot(h, p["w2"], precision=hp) + p["b2"]
    return jnp.squeeze(o)


if __name__ == "__main__":
    B, P, D = 2, 8, 32                       # batch, patches/tokens, hidden dim
    tasks = ("task_a", "task_b")
    output_dims = {"task_a": 4, "task_b": 1}

    root = jax.random.PRNGKey(0)
    kx, kparam = jax.random.split(root)
    x = jax.random.normal(kx, (B, P, D), jnp.float32)
    params = make_params(kparam, tasks, D, output_dims)

    # shipped path: bf16 weights / bf16 MXU operands, f32 accumulation
    outs_bf16 = processor_forward(x, params)                              # default bf16
    outs_bf16 = jax.tree_util.tree_map(jax.block_until_ready, outs_bf16)
    # exact-parity path: f32 weights
    outs_f32 = processor_forward(x, params, weights_dtype=jnp.float32)
    outs_f32 = jax.tree_util.tree_map(jax.block_until_ready, outs_f32)

    # verify against pure-JAX reference
    for tk in tasks:
        ref = reference_task(x, params[tk])
        assert outs_f32[tk].shape == ref.shape, (tk, outs_f32[tk].shape, ref.shape)
        assert jnp.allclose(outs_f32[tk], ref, atol=2e-4, rtol=2e-3), tk
        assert outs_bf16[tk].shape == ref.shape, (tk, outs_bf16[tk].shape, ref.shape)
        assert jnp.allclose(outs_bf16[tk], ref, atol=1e-3, rtol=5e-2), tk

    print("KERNEL_OK")
</pallas_src>

<mosaic_0001>
module attributes {stable_mosaic.version = 11 : i64} {
  func.func @_processor_kernel(%arg0: i32, %arg1: i32, %arg2: memref<2x8x32xf32, #tpu.memory_space<vmem>>, %arg3: memref<1x1x32xf32, #tpu.memory_space<vmem>>, %arg4: memref<1x32x32xbf16, #tpu.memory_space<vmem>>, %arg5: memref<1x1x32xf32, #tpu.memory_space<vmem>>, %arg6: memref<1x32x8xbf16, #tpu.memory_space<vmem>>, %arg7: memref<1x1x8xf32, #tpu.memory_space<vmem>>, %arg8: memref<1x8x128xbf16, #tpu.memory_space<vmem>>, %arg9: memref<1x1x128xf32, #tpu.memory_space<vmem>>, %arg10: memref<1x2x128xf32, #tpu.memory_space<vmem>>, %arg11: memref<2x32xf32, #tpu.memory_space<vmem>>, %arg12: memref<2x32xf32, #tpu.memory_space<vmem>>) attributes {dimension_semantics = [#tpu.dimension_semantics<parallel>, #tpu.dimension_semantics<arbitrary>], iteration_bounds = array<i64: 2, 1>, scalar_prefetch = 0 : i64, scratch_operands = 2 : i64, tpu.core_type = #tpu.core_type<tc>, window_params = [{pipeline_mode = #tpu.pipeline_mode<synchronous>, transform_indices = @transform_0, window_bounds = array<i64: 2, 8, 32>}, {transform_indices = @transform_1, window_bounds = array<i64: 1, 1, 32>}, {transform_indices = @transform_2, window_bounds = array<i64: 1, 32, 32>}, {transform_indices = @transform_3, window_bounds = array<i64: 1, 1, 32>}, {transform_indices = @transform_4, window_bounds = array<i64: 1, 32, 8>}, {transform_indices = @transform_5, window_bounds = array<i64: 1, 1, 8>}, {transform_indices = @transform_6, window_bounds = array<i64: 1, 8, 128>}, {transform_indices = @transform_7, window_bounds = array<i64: 1, 1, 128>}, {transform_indices = @transform_8, window_bounds = array<i64: 1, 2, 128>}]} {
    %c0_i32 = arith.constant 0 : i32
    %0 = arith.cmpi eq, %arg1, %c0_i32 : i32
    %1 = arith.extui %0 : i1 to i32
    %c0_i32_0 = arith.constant 0 : i32
    %2 = arith.cmpi ne, %1, %c0_i32_0 : i32
    scf.if %2 {
      %c0_11 = arith.constant 0 : index
      %c0_12 = arith.constant 0 : index
      %c0_13 = arith.constant 0 : index
      %14 = vector.load %arg2[%c0_11, %c0_12, %c0_13] : memref<2x8x32xf32, #tpu.memory_space<vmem>>, vector<2x8x32xf32>
      %c0_14 = arith.constant 0 : index
      %c0_15 = arith.constant 0 : index
      %c0_16 = arith.constant 0 : index
      %15 = vector.load %arg3[%c0_14, %c0_15, %c0_16] : memref<1x1x32xf32, #tpu.memory_space<vmem>>, vector<1x1x32xf32>
      %16 = vector.broadcast %15 : vector<1x1x32xf32> to vector<2x8x32xf32>
      %17 = arith.mulf %14, %16 : vector<2x8x32xf32>
      %cst_17 = arith.constant dense<0.000000e+00> : vector<2x8xf32>
      %18 = vector.multi_reduction <add>, %17, %cst_17 [2] : vector<2x8x32xf32> to vector<2x8xf32>
      %cst_18 = arith.constant dense<0xFF800000> : vector<2xf32>
      %19 = vector.multi_reduction <maximumf>, %18, %cst_18 [1] : vector<2x8xf32> to vector<2xf32>
      %20 = vector.shape_cast %19 : vector<2xf32> to vector<2x1xf32>
      %21 = vector.broadcast %20 : vector<2x1xf32> to vector<2x8xf32>
      %22 = arith.subf %18, %21 : vector<2x8xf32>
      %23 = math.exp %22 : vector<2x8xf32>
      %cst_19 = arith.constant dense<0.000000e+00> : vector<2xf32>
      %24 = vector.multi_reduction <add>, %23, %cst_19 [1] : vector<2x8xf32> to vector<2xf32>
      %25 = vector.shape_cast %24 : vector<2xf32> to vector<2x1xf32>
      %26 = tpu.reciprocal %25 {approx = true} : vector<2x1xf32> -> vector<2x1xf32>
      %27 = vector.broadcast %26 : vector<2x1xf32> to vector<2x8xf32>
      %28 = arith.mulf %23, %27 : vector<2x8xf32>
      %29 = vector.shape_cast %28 : vector<2x8xf32> to vector<2x8x1xf32>
      %30 = vector.broadcast %29 : vector<2x8x1xf32> to vector<2x8x32xf32>
      %31 = arith.mulf %30, %14 : vector<2x8x32xf32>
      %cst_20 = arith.constant dense<0.000000e+00> : vector<2x32xf32>
      %32 = vector.multi_reduction <add>, %31, %cst_20 [1] : vector<2x8x32xf32> to vector<2x32xf32>
      %c0_21 = arith.constant 0 : index
      %c0_22 = arith.constant 0 : index
      %33 = vector.load %arg11[%c0_21, %c0_22] : memref<2x32xf32, #tpu.memory_space<vmem>>, vector<2x32xf32>
      tpu.vector_store %arg11[%c0_21, %c0_22], %32 {strides = array<i32>} : memref<2x32xf32, #tpu.memory_space<vmem>>, vector<2x32xf32>,
      %cst_23 = arith.constant 0.000000e+00 : f32
      %34 = vector.broadcast %cst_23 : f32 to vector<2x32xf32>
      %c0_24 = arith.constant 0 : index
      %c0_25 = arith.constant 0 : index
      %35 = vector.load %arg12[%c0_24, %c0_25] : memref<2x32xf32, #tpu.memory_space<vmem>>, vector<2x32xf32>
      tpu.vector_store %arg12[%c0_24, %c0_25], %34 {strides = array<i32>} : memref<2x32xf32, #tpu.memory_space<vmem>>, vector<2x32xf32>,
    } else {
    }
    %c0 = arith.constant 0 : index
    %c0_1 = arith.constant 0 : index
    %3 = vector.load %arg11[%c0, %c0_1] : memref<2x32xf32, #tpu.memory_space<vmem>>, vector<2x32xf32>
    %c0_2 = arith.constant 0 : index
    %c0_3 = arith.constant 0 : index
    %4 = vector.load %arg12[%c0_2, %c0_3] : memref<2x32xf32, #tpu.memory_space<vmem>>, vector<2x32xf32>
    %5 = arith.truncf %3 : vector<2x32xf32> to vector<2x32xbf16>
    %c0_4 = arith.constant 0 : index
    %c0_5 = arith.constant 0 : index
    %c0_6 = arith.constant 0 : index
    %6 = vector.load %arg4[%c0_4, %c0_5, %c0_6] : memref<1x32x32xbf16, #tpu.memory_space<vmem>>, vector<1x32x32xbf16>
    %7 = vector.shape_cast %6 : vector<1x32x32xbf16> to vector<32x32xbf16>
    %cst = arith.constant dense<0.000000e+00> : vector<2x32xf32>
    %8 = tpu.matmul %5, %7, %cst {dimension_numbers = #tpu.dot_dimension_numbers<[1], [0], [0], [1], [0, 0, 1, 1], [], []>} : vector<2x32xbf16>, vector<32x32xbf16>, vector<2x32xf32> -> vector<2x32xf32>
    %9 = arith.addf %4, %8 : vector<2x32xf32>
    %c0_7 = arith.constant 0 : index
    %c0_8 = arith.constant 0 : index
    %10 = vector.load %arg12[%c0_7, %c0_8] : memref<2x32xf32, #tpu.memory_space<vmem>>, vector<2x32xf32>
    tpu.vector_store %arg12[%c0_7, %c0_8], %9 {strides = array<i32>} : memref<2x32xf32, #tpu.memory_space<vmem>>, vector<2x32xf32>,
    %c0_i32_9 = arith.constant 0 : i32
    %11 = arith.cmpi eq, %arg1, %c0_i32_9 : i32
    %12 = arith.extui %11 : i1 to i32
    %c0_i32_10 = arith.constant 0 : i32
    %13 = arith.cmpi ne, %12, %c0_i32_10 : i32
    scf.if %13 {
      %c0_11 = arith.constant 0 : index
      %c0_12 = arith.constant 0 : index
      %14 = vector.load %arg12[%c0_11, %c0_12] : memref<2x32xf32, #tpu.memory_space<vmem>>, vector<2x32xf32>
      %c0_13 = arith.constant 0 : index
      %c0_14 = arith.constant 0 : index
      %c0_15 = arith.constant 0 : index
      %15 = vector.load %arg5[%c0_13, %c0_14, %c0_15] : memref<1x1x32xf32, #tpu.memory_space<vmem>>, vector<1x1x32xf32>
      %16 = vector.shape_cast %15 : vector<1x1x32xf32> to vector<1x32xf32>
      %17 = vector.broadcast %16 : vector<1x32xf32> to vector<2x32xf32>
      %18 = arith.addf %14, %17 : vector<2x32xf32>
      %19 = arith.truncf %18 : vector<2x32xf32> to vector<2x32xbf16>
      %c0_16 = arith.constant 0 : index
      %c0_17 = arith.constant 0 : index
      %c0_18 = arith.constant 0 : index
      %20 = vector.load %arg6[%c0_16, %c0_17, %c0_18] : memref<1x32x8xbf16, #tpu.memory_space<vmem>>, vector<1x32x8xbf16>
      %21 = vector.shape_cast %20 : vector<1x32x8xbf16> to vector<32x8xbf16>
      %cst_19 = arith.constant dense<0.000000e+00> : vector<2x8xf32>
      %22 = tpu.matmul %19, %21, %cst_19 {dimension_numbers = #tpu.dot_dimension_numbers<[1], [0], [0], [1], [0, 0, 1, 1], [], []>} : vector<2x32xbf16>, vector<32x8xbf16>, vector<2x8xf32> -> vector<2x8xf32>
      %c0_20 = arith.constant 0 : index
      %c0_21 = arith.constant 0 : index
      %c0_22 = arith.constant 0 : index
      %23 = vector.load %arg7[%c0_20, %c0_21, %c0_22] : memref<1x1x8xf32, #tpu.memory_space<vmem>>, vector<1x1x8xf32>
      %24 = vector.shape_cast %23 : vector<1x1x8xf32> to vector<1x8xf32>
      %25 = vector.broadcast %24 : vector<1x8xf32> to vector<2x8xf32>
      %26 = arith.addf %22, %25 : vector<2x8xf32>
      %cst_23 = arith.constant 5.000000e-01 : f32
      %27 = vector.broadcast %cst_23 : f32 to vector<2x8xf32>
      %28 = arith.mulf %27, %26 : vector<2x8xf32>
      %cst_24 = arith.constant 0.707106769 : f32
      %29 = vector.broadcast %cst_24 : f32 to vector<2x8xf32>
      %30 = arith.mulf %26, %29 : vector<2x8xf32>
      %31 = math.erf %30 : vector<2x8xf32>
      %cst_25 = arith.constant 1.000000e+00 : f32
      %32 = vector.broadcast %cst_25 : f32 to vector<2x8xf32>
      %33 = arith.addf %32, %31 : vector<2x8xf32>
      %34 = arith.mulf %28, %33 : vector<2x8xf32>
      %35 = arith.truncf %34 : vector<2x8xf32> to vector<2x8xbf16>
      %c0_26 = arith.constant 0 : index
      %c0_27 = arith.constant 0 : index
      %c0_28 = arith.constant 0 : index
      %36 = vector.load %arg8[%c0_26, %c0_27, %c0_28] : memref<1x8x128xbf16, #tpu.memory_space<vmem>>, vector<1x8x128xbf16>
      %37 = vector.shape_cast %36 : vector<1x8x128xbf16> to vector<8x128xbf16>
      %cst_29 = arith.constant dense<0.000000e+00> : vector<2x128xf32>
      %38 = tpu.matmul %35, %37, %cst_29 {dimension_numbers = #tpu.dot_dimension_numbers<[1], [0], [0], [1], [0, 0, 1, 1], [], []>} : vector<2x8xbf16>, vector<8x128xbf16>, vector<2x128xf32> -> vector<2x128xf32>
      %c0_30 = arith.constant 0 : index
      %c0_31 = arith.constant 0 : index
      %c0_32 = arith.constant 0 : index
      %39 = vector.load %arg9[%c0_30, %c0_31, %c0_32] : memref<1x1x128xf32, #tpu.memory_space<vmem>>, vector<1x1x128xf32>
      %40 = vector.shape_cast %39 : vector<1x1x128xf32> to vector<1x128xf32>
      %41 = vector.broadcast %40 : vector<1x128xf32> to vector<2x128xf32>
      %42 = arith.addf %38, %41 : vector<2x128xf32>
      %c0_33 = arith.constant 0 : index
      %c0_34 = arith.constant 0 : index
      %c0_35 = arith.constant 0 : index
      %43 = vector.load %arg10[%c0_33, %c0_34, %c0_35] : memref<1x2x128xf32, #tpu.memory_space<vmem>>, vector<1x2x128xf32>
      %44 = vector.shape_cast %43 : vector<1x2x128xf32> to vector<2x128xf32>
      %45 = vector.shape_cast %42 : vector<2x128xf32> to vector<1x2x128xf32>
      tpu.vector_store %arg10[%c0_33, %c0_34, %c0_35], %45 {strides = array<i32>} : memref<1x2x128xf32, #tpu.memory_space<vmem>>, vector<1x2x128xf32>,
    } else {
    }
    return
  }
  func.func @transform_0(%arg0: i32, %arg1: i32) -> (i32, i32, i32) {
    %c0_i32 = arith.constant 0 : i32
    %c0_i32_0 = arith.constant 0 : i32
    %c0_i32_1 = arith.constant 0 : i32
    %c0_i32_2 = arith.constant 0 : i32
    return %c0_i32, %c0_i32_0, %c0_i32_1 : i32, i32, i32
  }
  func.func @transform_1(%arg0: i32, %arg1: i32) -> (i32, i32, i32) {
    %c0_i32 = arith.constant 0 : i32
    %c0_i32_0 = arith.constant 0 : i32
    %c0_i32_1 = arith.constant 0 : i32
    return %arg0, %c0_i32, %c0_i32_0 : i32, i32, i32
  }
  func.func @transform_2(%arg0: i32, %arg1: i32) -> (i32, i32, i32) {
    %c0_i32 = arith.constant 0 : i32
    %c0_i32_0 = arith.constant 0 : i32
    return %arg0, %arg1, %c0_i32 : i32, i32, i32
  }
  func.func @transform_3(%arg0: i32, %arg1: i32) -> (i32, i32, i32) {
    %c0_i32 = arith.constant 0 : i32
    %c0_i32_0 = arith.constant 0 : i32
    %c0_i32_1 = arith.constant 0 : i32
    return %arg0, %c0_i32, %c0_i32_0 : i32, i32, i32
  }
  func.func @transform_4(%arg0: i32, %arg1: i32) -> (i32, i32, i32) {
    %c0_i32 = arith.constant 0 : i32
    %c0_i32_0 = arith.constant 0 : i32
    %c0_i32_1 = arith.constant 0 : i32
    return %arg0, %c0_i32, %c0_i32_0 : i32, i32, i32
  }
  func.func @transform_5(%arg0: i32, %arg1: i32) -> (i32, i32, i32) {
    %c0_i32 = arith.constant 0 : i32
    %c0_i32_0 = arith.constant 0 : i32
    %c0_i32_1 = arith.constant 0 : i32
    return %arg0, %c0_i32, %c0_i32_0 : i32, i32, i32
  }
  func.func @transform_6(%arg0: i32, %arg1: i32) -> (i32, i32, i32) {
    %c0_i32 = arith.constant 0 : i32
    %c0_i32_0 = arith.constant 0 : i32
    %c0_i32_1 = arith.constant 0 : i32
    return %arg0, %c0_i32, %c0_i32_0 : i32, i32, i32
  }
  func.func @transform_7(%arg0: i32, %arg1: i32) -> (i32, i32, i32) {
    %c0_i32 = arith.constant 0 : i32
    %c0_i32_0 = arith.constant 0 : i32
    %c0_i32_1 = arith.constant 0 : i32
    return %arg0, %c0_i32, %c0_i32_0 : i32, i32, i32
  }
  func.func @transform_8(%arg0: i32, %arg1: i32) -> (i32, i32, i32) {
    %c0_i32 = arith.constant 0 : i32
    %c0_i32_0 = arith.constant 0 : i32
    %c0_i32_1 = arith.constant 0 : i32
    return %arg0, %c0_i32, %c0_i32_0 : i32, i32, i32
  }
}

</mosaic_0001>

<llo_original>
// kernel: tpu_custom_call.1
$region0: #{tpu_custom_call.1}
  #allocation0 [shape = 'u32[]', space=smem, size = 0x4, offset = 0x4, fixed_abs, tag = 'smem constant byte address 0x4 - core index']
  #allocation1 [shape = 'u32[144,128]{1,0:T(1,128)}', space=vmem, size = 0x12000, scoped, tag = 'internal scratch']
  #allocation2 [shape = 'f32[2,32]{1,0:T(2,128)}', space=vmem, size = 0x400, scoped, tag = 'scratch operand']
  #allocation3 [shape = 'f32[2,32]{1,0:T(2,128)}', space=vmem, size = 0x400, scoped, tag = 'scratch operand']
  %s0 = inlined_call_operand.hbm [shape: f32[2,8,32], index: 0, kind: input, shape index: {}]
  %s1 = inlined_call_operand.vmem [shape: f32[2,1,32], index: 1, kind: input, shape index: {}]
  %s2 = inlined_call_operand.vmem [shape: bf16[2,32,32], index: 2, kind: input, shape index: {}]
  %s3 = inlined_call_operand.vmem [shape: f32[2,1,32], index: 3, kind: input, shape index: {}]
  %s4 = inlined_call_operand.vmem [shape: bf16[2,32,8], index: 4, kind: input, shape index: {}]
  %s5 = inlined_call_operand.vmem [shape: f32[2,1,8], index: 5, kind: input, shape index: {}]
  %s6 = inlined_call_operand.vmem [shape: bf16[2,8,128], index: 6, kind: input, shape index: {}]
  %s7 = inlined_call_operand.vmem [shape: f32[2,1,128], index: 7, kind: input, shape index: {}]
  %s8 = inlined_call_operand.hbm [shape: f32[2,2,128], index: 8, kind: output, shape index: {}]
  %s9 = sld [smem:[#allocation0]]
  $region77: #{tpu_custom_call.1} parent=0
    _
  %s11 = ssub.s32 1, %s9
  %s12 = scalar_select 0, %s11, %s9
  $region1: #{tpu_custom_call.1} parent=0
    #allocation4 [shape = 'u8[8192]{0}', space=vmem, size = 0x2000, scoped, tag = 'input window, operand 0, single buffered']
    #allocation5 [shape = 's32[2]{0}', space=sflag, size = 0x8, scoped, tag = 'scoped memory for tpu_custom_call.1']
    #allocation6 [shape = 's32[2]{0}', space=sflag, size = 0x8, scoped, tag = 'scoped memory for tpu_custom_call.1']
    #allocation7 [shape = 'u8[2048]{0}', space=vmem, size = 0x800, scoped, tag = 'output window, operand 0']
    %13 = vsyncpa [#allocation5], 0
    %14 = vsyncpa [#allocation6], 0
    %s15 = scalar_lea.sflag [#allocation6], 1
    %16 = vsyncpa %s15, 0
    loop: start=0, step=1, limit=4
    $region2: #{tpu_custom_call.1} parent=1 // loop_pre_header
      _
    $region3: #{tpu_custom_call.1} parent=1 // loop_header
      %s18 = sphi 0, %s22
      %p19 = scmp.ge.s32.totalorder %s18, 4
      %s25 = sphi 0, %s37
      %s26 = sphi 0, %s33
      %s27 = sphi 0, %s25
      %s28 = sphi 0, %s26
      %s29 = sphi 0, %s27
      %s30 = sphi 0, %s28
      %s38 = sphi 0, %s38
      %s40 = sphi 0, %s38
      %s41 = sphi 0, %s40
      %s55 = sphi 0, %s41
      %s61 = sphi 0, %s63
      %s64 = sphi 0, %s61
      %s65 = sphi 0, %s64
      %s81 = sphi 0, %s65
      %s89 = sphi 0, %s91
      %s92 = sphi 0, %s89
      %s93 = sphi 0, %s92
      %s109 = sphi 0, %s93
      %s115 = sphi 0, %s117
      %s118 = sphi 0, %s115
      %s119 = sphi 0, %s118
      %s135 = sphi 0, %s119
      %s141 = sphi 0, %s143
      %s144 = sphi 0, %s141
      %s145 = sphi 0, %s144
      %s161 = sphi 0, %s145
      %s167 = sphi 0, %s169
      %s170 = sphi 0, %s167
      %s171 = sphi 0, %s170
      %s187 = sphi 0, %s171
      %s193 = sphi 0, %s195
      %s196 = sphi 0, %s193
      %s197 = sphi 0, %s196
      %s213 = sphi 0, %s197
      %s219 = sphi 0, %s221
      %s222 = sphi 0, %s219
      %s223 = sphi 0, %s222
      %s239 = sphi 0, %s223
      %s245 = sphi 0, %s247
      %s248 = sphi 0, %s245
      %s249 = sphi 0, %s248
      %s265 = sphi 0, %s249
    $region4: #{tpu_custom_call.1} parent=1 // loop_header_branch
      %21 = sbr.rel (%p19) target = $region8
    $region5: #{tpu_custom_call.1} parent=1 // loop_body
      %s23 = ssub.s32 %s18, 1
      %s24 = ssub.s32 %s18, 2
      %s31 = sadd.s32 1, %s26
      %p32 = scmp.ge.s32.totalorder %s31, 1
      %s33 = scalar_select %p32, 0, %s31
      %s34 = sadd.s32 1, %s25
      %s35 = scalar_select %p32, %s34, %s25
      %p36 = scmp.ge.s32.totalorder %s35, 2
      %s37 = scalar_select %p36, 0, %s35
      %s39 = sadd.s32 %s38, 1
      %p42 = scmp.eq.s32.totalorder %s18, 1
      %p43 = scmp.ne.s32.totalorder %s38, %s40
      %p44 = scmp.eq.s32.totalorder %s18, 0
      %p45 = por %p43, %p44
      %p46 = scmp.ne.s32.totalorder %s38, %s40
      %p47 = scmp.eq.s32.totalorder %s23, 1
      %p48 = por %p46, %p47
      %p49 = scmp.ne.s32.totalorder %s40, %s41
      %p50 = scmp.eq.s32.totalorder %s23, 0
      %p51 = por %p49, %p50
      %p52 = scmp.ne.s32.totalorder %s40, %s41
      %p53 = scmp.eq.s32.totalorder %s24, 1
      %p54 = por %p52, %p53
      %p56 = scmp.ne.s32.totalorder %s41, %s55
      %p57 = scmp.eq.s32.totalorder %s24, 0
      %p58 = por %p56, %p57
      %s59 = ssub.s32 %s25, %s37
      %p60 = scmp.eq.s32.totalorder %s59, 0
      %s62 = sadd.s32 %s61, 1
      %s63 = scalar_select %p60, %s61, %s62
      %p66 = pneg %p60
      %p67 = scmp.eq.s32.totalorder %s18, 1
      %p68 = por %p66, %p67
      %p69 = scmp.ne.s32.totalorder %s61, %s64
      %p70 = scmp.eq.s32.totalorder %s18, 0
      %p71 = por %p69, %p70
      %p72 = scmp.ne.s32.totalorder %s61, %s64
      %p73 = scmp.eq.s32.totalorder %s23, 1
      %p74 = por %p72, %p73
      %p75 = scmp.ne.s32.totalorder %s64, %s65
      %p76 = scmp.eq.s32.totalorder %s23, 0
      %p77 = por %p75, %p76
      %p78 = scmp.ne.s32.totalorder %s64, %s65
      %p79 = scmp.eq.s32.totalorder %s24, 1
      %p80 = por %p78, %p79
      %p82 = scmp.ne.s32.totalorder %s65, %s81
      %p83 = scmp.eq.s32.totalorder %s24, 0
      %p84 = por %p82, %p83
      %s85 = ssub.s32 %s25, %s37
      %s86 = ssub.s32 %s26, %s33
      %s87 = sor.u32 %s85, %s86
      %p88 = scmp.eq.s32.totalorder %s87, 0
      %s90 = sadd.s32 %s89, 1
      %s91 = scalar_select %p88, %s89, %s90
      %p94 = pneg %p88
      %p95 = scmp.eq.s32.totalorder %s18, 1
      %p96 = por %p94, %p95
      %p97 = scmp.ne.s32.totalorder %s89, %s92
      %p98 = scmp.eq.s32.totalorder %s18, 0
      %p99 = por %p97, %p98
      %p100 = scmp.ne.s32.totalorder %s89, %s92
      %p101 = scmp.eq.s32.totalorder %s23, 1
      %p102 = por %p100, %p101
      %p103 = scmp.ne.s32.totalorder %s92, %s93
      %p104 = scmp.eq.s32.totalorder %s23, 0
      %p105 = por %p103, %p104
      %p106 = scmp.ne.s32.totalorder %s92, %s93
      %p107 = scmp.eq.s32.totalorder %s24, 1
      %p108 = por %p106, %p107
      %p110 = scmp.ne.s32.totalorder %s93, %s109
      %p111 = scmp.eq.s32.totalorder %s24, 0
      %p112 = por %p110, %p111
      %s113 = ssub.s32 %s25, %s37
      %p114 = scmp.eq.s32.totalorder %s113, 0
      %s116 = sadd.s32 %s115, 1
      %s117 = scalar_select %p114, %s115, %s116
      %p120 = pneg %p114
      %p121 = scmp.eq.s32.totalorder %s18, 1
      %p122 = por %p120, %p121
      %p123 = scmp.ne.s32.totalorder %s115, %s118
      %p124 = scmp.eq.s32.totalorder %s18, 0
      %p125 = por %p123, %p124
      %p126 = scmp.ne.s32.totalorder %s115, %s118
      %p127 = scmp.eq.s32.totalorder %s23, 1
      %p128 = por %p126, %p127
      %p129 = scmp.ne.s32.totalorder %s118, %s119
      %p130 = scmp.eq.s32.totalorder %s23, 0
      %p131 = por %p129, %p130
      %p132 = scmp.ne.s32.totalorder %s118, %s119
      %p133 = scmp.eq.s32.totalorder %s24, 1
      %p134 = por %p132, %p133
      %p136 = scmp.ne.s32.totalorder %s119, %s135
      %p137 = scmp.eq.s32.totalorder %s24, 0
      %p138 = por %p136, %p137
      %s139 = ssub.s32 %s25, %s37
      %p140 = scmp.eq.s32.totalorder %s139, 0
      %s142 = sadd.s32 %s141, 1
      %s143 = scalar_select %p140, %s141, %s142
      %p146 = pneg %p140
      %p147 = scmp.eq.s32.totalorder %s18, 1
      %p148 = por %p146, %p147
      %p149 = scmp.ne.s32.totalorder %s141, %s144
      %p150 = scmp.eq.s32.totalorder %s18, 0
      %p151 = por %p149, %p150
      %p152 = scmp.ne.s32.totalorder %s141, %s144
      %p153 = scmp.eq.s32.totalorder %s23, 1
      %p154 = por %p152, %p153
      %p155 = scmp.ne.s32.totalorder %s144, %s145
      %p156 = scmp.eq.s32.totalorder %s23, 0
      %p157 = por %p155, %p156
      %p158 = scmp.ne.s32.totalorder %s144, %s145
      %p159 = scmp.eq.s32.totalorder %s24, 1
      %p160 = por %p158, %p159
      %p162 = scmp.ne.s32.totalorder %s145, %s161
      %p163 = scmp.eq.s32.totalorder %s24, 0
      %p164 = por %p162, %p163
      %s165 = ssub.s32 %s25, %s37
      %p166 = scmp.eq.s32.totalorder %s165, 0
      %s168 = sadd.s32 %s167, 1
      %s169 = scalar_select %p166, %s167, %s168
      %p172 = pneg %p166
      %p173 = scmp.eq.s32.totalorder %s18, 1
      %p174 = por %p172, %p173
      %p175 = scmp.ne.s32.totalorder %s167, %s170
      %p176 = scmp.eq.s32.totalorder %s18, 0
      %p177 = por %p175, %p176
      %p178 = scmp.ne.s32.totalorder %s167, %s170
      %p179 = scmp.eq.s32.totalorder %s23, 1
      %p180 = por %p178, %p179
      %p181 = scmp.ne.s32.totalorder %s170, %s171
      %p182 = scmp.eq.s32.totalorder %s23, 0
      %p183 = por %p181, %p182
      %p184 = scmp.ne.s32.totalorder %s170, %s171
      %p185 = scmp.eq.s32.totalorder %s24, 1
      %p186 = por %p184, %p185
      %p188 = scmp.ne.s32.totalorder %s171, %s187
      %p189 = scmp.eq.s32.totalorder %s24, 0
      %p190 = por %p188, %p189
      %s191 = ssub.s32 %s25, %s37
      %p192 = scmp.eq.s32.totalorder %s191, 0
      %s194 = sadd.s32 %s193, 1
      %s195 = scalar_select %p192, %s193, %s194
      %p198 = pneg %p192
      %p199 = scmp.eq.s32.totalorder %s18, 1
      %p200 = por %p198, %p199
      %p201 = scmp.ne.s32.totalorder %s193, %s196
      %p202 = scmp.eq.s32.totalorder %s18, 0
      %p203 = por %p201, %p202
      %p204 = scmp.ne.s32.totalorder %s193, %s196
      %p205 = scmp.eq.s32.totalorder %s23, 1
      %p206 = por %p204, %p205
      %p207 = scmp.ne.s32.totalorder %s196, %s197
      %p208 = scmp.eq.s32.totalorder %s23, 0
      %p209 = por %p207, %p208
      %p210 = scmp.ne.s32.totalorder %s196, %s197
      %p211 = scmp.eq.s32.totalorder %s24, 1
      %p212 = por %p210, %p211
      %p214 = scmp.ne.s32.totalorder %s197, %s213
      %p215 = scmp.eq.s32.totalorder %s24, 0
      %p216 = por %p214, %p215
      %s217 = ssub.s32 %s25, %s37
      %p218 = scmp.eq.s32.totalorder %s217, 0
      %s220 = sadd.s32 %s219, 1
      %s221 = scalar_select %p218, %s219, %s220
      %p224 = pneg %p218
      %p225 = scmp.eq.s32.totalorder %s18, 1
      %p226 = por %p224, %p225
      %p227 = scmp.ne.s32.totalorder %s219, %s222
      %p228 = scmp.eq.s32.totalorder %s18, 0
      %p229 = por %p227, %p228
      %p230 = scmp.ne.s32.totalorder %s219, %s222
      %p231 = scmp.eq.s32.totalorder %s23, 1
      %p232 = por %p230, %p231
      %p233 = scmp.ne.s32.totalorder %s222, %s223
      %p234 = scmp.eq.s32.totalorder %s23, 0
      %p235 = por %p233, %p234
      %p236 = scmp.ne.s32.totalorder %s222, %s223
      %p237 = scmp.eq.s32.totalorder %s24, 1
      %p238 = por %p236, %p237
      %p240 = scmp.ne.s32.totalorder %s223, %s239
      %p241 = scmp.eq.s32.totalorder %s24, 0
      %p242 = por %p240, %p241
      %s243 = ssub.s32 %s25, %s37
      %p244 = scmp.eq.s32.totalorder %s243, 0
      %s246 = sadd.s32 %s245, 1
      %s247 = scalar_select %p244, %s245, %s246
      %p250 = pneg %p244
      %p251 = scmp.eq.s32.totalorder %s18, 1
      %p252 = por %p250, %p251
      %p253 = scmp.ne.s32.totalorder %s245, %s248
      %p254 = scmp.eq.s32.totalorder %s18, 0
      %p255 = por %p253, %p254
      %p256 = scmp.ne.s32.totalorder %s245, %s248
      %p257 = scmp.eq.s32.totalorder %s23, 1
      %p258 = por %p256, %p257
      %p259 = scmp.ne.s32.totalorder %s248, %s249
      %p260 = scmp.eq.s32.totalorder %s23, 0
      %p261 = por %p259, %p260
      %p262 = scmp.ne.s32.totalorder %s248, %s249
      %p263 = scmp.eq.s32.totalorder %s24, 1
      %p264 = por %p262, %p263
      %p266 = scmp.ne.s32.totalorder %s249, %s265
      %p267 = scmp.eq.s32.totalorder %s24, 0
      %p268 = por %p266, %p267
      %p269 = scmp.le.s32.totalorder 1, %s18
      %p270 = scmp.lt.s32.totalorder %s18, 3
      %p271 = pnand %p269, %p270
      %p272 = pneg %p271
      // Predicated region
      $region9: #{tpu_custom_call.1} parent=5 // pred_check
        _
      $region10: #{tpu_custom_call.1} parent=5 // pred_check_branch
        %274 = sbr.rel (%p271) target = $region12
      $region11: #{tpu_custom_call.1} parent=5 // pred_region
        %s275 = ssub.s32 %s18, 1
        // Predicated region
        $region13: #{tpu_custom_call.1} parent=11 // pred_check
          %p276 = pneg %p51
        $region14: #{tpu_custom_call.1} parent=11 // pred_check_branch
          %278 = sbr.rel (%p276) target = $region16
        $region15: #{tpu_custom_call.1} parent=11 // pred_region
          %s280 = ssub.s32 256, 256
          %281 = vsyncadd [#allocation5], %s280
          %s282 = sshll.u32 [#allocation4], 4
          %s283 = int_to_ptr.vmem [resolvable:$true] %s282
          %288 = dma.hbm_to_vmem [thread:$0]  %s0, 256, %s283, [#allocation5], 128, 128, 8
        $region16: #{tpu_custom_call.1} parent=11 // pred_fallthru
          _
      $region12: #{tpu_custom_call.1} parent=5 // pred_fallthru
        _
      %p289 = scmp.lt.s32.totalorder %s18, 2
      // Predicated region
      $region17: #{tpu_custom_call.1} parent=5 // pred_check
        %p290 = pneg %p289
      $region18: #{tpu_custom_call.1} parent=5 // pred_check_branch
        %292 = sbr.rel (%p290) target = $region20
      $region19: #{tpu_custom_call.1} parent=5 // pred_region
        // Predicated region
        $region21: #{tpu_custom_call.1} parent=19 // pred_check
          %p293 = pneg %p71
        $region22: #{tpu_custom_call.1} parent=19 // pred_check_branch
          %295 = sbr.rel (%p293) target = $region24
        $region23: #{tpu_custom_call.1} parent=19 // pred_region
          %p296 = scmp.lt.s32.totalorder %s25, 1
          %s297 = scalar_select %p296, %s25, 1
          %s298 = scalar_lea.vmem %s1, %s297
        $region24: #{tpu_custom_call.1} parent=19 // pred_fallthru
          _
        // Predicated region
        $region25: #{tpu_custom_call.1} parent=19 // pred_check
          %p299 = pneg %p99
        $region26: #{tpu_custom_call.1} parent=19 // pred_check_branch
          %301 = sbr.rel (%p299) target = $region28
        $region27: #{tpu_custom_call.1} parent=19 // pred_region
          %s302 = smul.u32 4, %s26
          %p303 = scmp.lt.s32.totalorder %s25, 1
          %s304 = scalar_select %p303, %s25, 1
          %p305 = scmp.lt.s32.totalorder %s302, 3
          %s306 = scalar_select %p305, %s302, 3
          %s307 = smul.addr %s304, 4
          %s308 = sadd.s32 %s306, %s307
          %s309 = smul.addr %s308, 4
          %s310 = scalar_lea.vmem %s2, %s309
          %s311 = smul.u32 4, %s26
        $region28: #{tpu_custom_call.1} parent=19 // pred_fallthru
          _
        // Predicated region
        $region29: #{tpu_custom_call.1} parent=19 // pred_check
          %p312 = pneg %p125
        $region30: #{tpu_custom_call.1} parent=19 // pred_check_branch
          %314 = sbr.rel (%p312) target = $region32
        $region31: #{tpu_custom_call.1} parent=19 // pred_region
          %p315 = scmp.lt.s32.totalorder %s25, 1
          %s316 = scalar_select %p315, %s25, 1
          %s317 = scalar_lea.vmem %s3, %s316
        $region32: #{tpu_custom_call.1} parent=19 // pred_fallthru
          _
        // Predicated region
        $region33: #{tpu_custom_call.1} parent=19 // pred_check
          %p318 = pneg %p151
        $region34: #{tpu_custom_call.1} parent=19 // pred_check_branch
          %320 = sbr.rel (%p318) target = $region36
        $region35: #{tpu_custom_call.1} parent=19 // pred_region
          %p321 = scmp.lt.s32.totalorder %s25, 1
          %s322 = scalar_select %p321, %s25, 1
          %s323 = smul.addr %s322, 4
          %s324 = smul.addr %s323, 4
          %s325 = scalar_lea.vmem %s4, %s324
        $region36: #{tpu_custom_call.1} parent=19 // pred_fallthru
          _
        // Predicated region
        $region37: #{tpu_custom_call.1} parent=19 // pred_check
          %p326 = pneg %p177
        $region38: #{tpu_custom_call.1} parent=19 // pred_check_branch
          %328 = sbr.rel (%p326) target = $region40
        $region39: #{tpu_custom_call.1} parent=19 // pred_region
          %p329 = scmp.lt.s32.totalorder %s25, 1
          %s330 = scalar_select %p329, %s25, 1
          %s331 = scalar_lea.vmem %s5, %s330
        $region40: #{tpu_custom_call.1} parent=19 // pred_fallthru
          _
        // Predicated region
        $region41: #{tpu_custom_call.1} parent=19 // pred_check
          %p332 = pneg %p203
        $region42: #{tpu_custom_call.1} parent=19 // pred_check_branch
          %334 = sbr.rel (%p332) target = $region44
        $region43: #{tpu_custom_call.1} parent=19 // pred_region
          %p335 = scmp.lt.s32.totalorder %s25, 1
          %s336 = scalar_select %p335, %s25, 1
          %s337 = smul.addr %s336, 4
          %s338 = scalar_lea.vmem %s6, %s337
        $region44: #{tpu_custom_call.1} parent=19 // pred_fallthru
          _
        // Predicated region
        $region45: #{tpu_custom_call.1} parent=19 // pred_check
          %p339 = pneg %p229
        $region46: #{tpu_custom_call.1} parent=19 // pred_check_branch
          %341 = sbr.rel (%p339) target = $region48
        $region47: #{tpu_custom_call.1} parent=19 // pred_region
          %p342 = scmp.lt.s32.totalorder %s25, 1
          %s343 = scalar_select %p342, %s25, 1
          %s344 = scalar_lea.vmem %s7, %s343
        $region48: #{tpu_custom_call.1} parent=19 // pred_fallthru
          _
      $region20: #{tpu_custom_call.1} parent=5 // pred_fallthru
        _
      %p345 = scmp.le.s32.totalorder 1, %s18
      %p346 = scmp.lt.s32.totalorder %s18, 3
      %p347 = pnand %p345, %p346
      %p348 = pneg %p347
      // Predicated region
      $region49: #{tpu_custom_call.1} parent=5 // pred_check
        _
      $region50: #{tpu_custom_call.1} parent=5 // pred_check_branch
        %350 = sbr.rel (%p347) target = $region52
      $region51: #{tpu_custom_call.1} parent=5 // pred_region
        %s351 = ssub.s32 %s18, 1
        // Predicated region
        $region53: #{tpu_custom_call.1} parent=51 // pred_check
          %p352 = pneg %p51
        $region54: #{tpu_custom_call.1} parent=51 // pred_check_branch
          %354 = sbr.rel (%p352) target = $region56
        $region55: #{tpu_custom_call.1} parent=51 // pred_region
          %355 = dma.done [#allocation5], 256
        $region56: #{tpu_custom_call.1} parent=51 // pred_fallthru
          _
        %p356 = pneg %p51
        %p357 = pneg %p48
        %p358 = scmp.lt.s32.totalorder %s27, 1
        %s359 = scalar_select %p358, %s27, 1
        %s360 = scalar_lea.vmem %s1, %s359
        %p361 = pneg %p77
        %p362 = pneg %p74
        %s363 = smul.u32 4, %s28
        %p364 = scmp.lt.s32.totalorder %s27, 1
        %s365 = scalar_select %p364, %s27, 1
        %p366 = scmp.lt.s32.totalorder %s363, 3
        %s367 = scalar_select %p366, %s363, 3
        %s368 = smul.addr %s365, 4
        %s369 = sadd.s32 %s367, %s368
        %s370 = smul.addr %s369, 4
        %s371 = scalar_lea.vmem %s2, %s370
        %p372 = pneg %p105
        %p373 = pneg %p102
        %p374 = scmp.lt.s32.totalorder %s27, 1
        %s375 = scalar_select %p374, %s27, 1
        %s376 = scalar_lea.vmem %s3, %s375
        %p377 = pneg %p131
        %p378 = pneg %p128
        %p379 = scmp.lt.s32.totalorder %s27, 1
        %s380 = scalar_select %p379, %s27, 1
        %s381 = smul.addr %s380, 4
        %s382 = smul.addr %s381, 4
        %s383 = scalar_lea.vmem %s4, %s382
        %p384 = pneg %p157
        %p385 = pneg %p154
        %p386 = scmp.lt.s32.totalorder %s27, 1
        %s387 = scalar_select %p386, %s27, 1
        %s388 = scalar_lea.vmem %s5, %s387
        %p389 = pneg %p183
        %p390 = pneg %p180
        %p391 = scmp.lt.s32.totalorder %s27, 1
        %s392 = scalar_select %p391, %s27, 1
        %s393 = smul.addr %s392, 4
        %s394 = scalar_lea.vmem %s6, %s393
        %p395 = pneg %p209
        %p396 = pneg %p206
        %p397 = scmp.lt.s32.totalorder %s27, 1
        %s398 = scalar_select %p397, %s27, 1
        %s399 = scalar_lea.vmem %s7, %s398
        %p400 = pneg %p235
        %p401 = pneg %p232
        %p402 = pneg %p261
        %p403 = pneg %p258
        %s404 = sand.u32 %s248, 1
        %s405 = scalar_lea.sflag [#allocation6], %s404
        %s406 = sand.u32 %s248, 1
        %s407 = smul.addr %s406, 2
        %s408 = scalar_lea.vmem [#allocation7], %s407
        %p409 = scmp.lt.s32.totalorder %s27, 1
        %s410 = scalar_select %p409, %s27, 1
        %s411 = scalar_lea.vmem %s1, %s410
        %s412 = smul.u32 4, %s28
        %p413 = scmp.lt.s32.totalorder %s27, 1
        %s414 = scalar_select %p413, %s27, 1
        %p415 = scmp.lt.s32.totalorder %s412, 3
        %s416 = scalar_select %p415, %s412, 3
        %s417 = smul.addr %s414, 4
        %s418 = sadd.s32 %s416, %s417
        %s419 = smul.addr %s418, 4
        %s420 = scalar_lea.vmem %s2, %s419
        %s421 = smul.u32 4, %s28
        %p422 = scmp.lt.s32.totalorder %s27, 1
        %s423 = scalar_select %p422, %s27, 1
        %s424 = scalar_lea.vmem %s3, %s423
        %p425 = scmp.lt.s32.totalorder %s27, 1
        %s426 = scalar_select %p425, %s27, 1
        %s427 = smul.addr %s426, 4
        %s428 = smul.addr %s427, 4
        %s429 = scalar_lea.vmem %s4, %s428
        %p430 = scmp.lt.s32.totalorder %s27, 1
        %s431 = scalar_select %p430, %s27, 1
        %s432 = scalar_lea.vmem %s5, %s431
        %p433 = scmp.lt.s32.totalorder %s27, 1
        %s434 = scalar_select %p433, %s27, 1
        %s435 = smul.addr %s434, 4
        %s436 = scalar_lea.vmem %s6, %s435
        %p437 = scmp.lt.s32.totalorder %s27, 1
        %s438 = scalar_select %p437, %s27, 1
        %s439 = scalar_lea.vmem %s7, %s438
        %p441 = scmp.eq.s32.totalorder %s28, 0
        // Predicated region
        $region57: #{tpu_custom_call.1} parent=51 // pred_check
          %p442 = pneg %p441
        $region58: #{tpu_custom_call.1} parent=51 // pred_check_branch
          %444 = sbr.rel (%p442) target = $region60
        $region59: #{tpu_custom_call.1} parent=51 // pred_region
          %v445 = vld [vmem:[#allocation4] sm:$0xff]
          %v446 = vld [vmem:[#allocation4 + $0x8] sm:$0xff]
          %v447 = vld [vmem:[%s411] sm:$0x1]
          %v449 = vlaneseq
          %v450 = vshrl.u32 %v449, 7
          %v451 = vsub.s32 0, %v450
          %v452 = vrot.slane %v447, %v451
          %v454 = vmul.f32 %v445, %v452
          %v455 = vmul.f32 %v446, %v452
          %vm456 = vcmask 261120
          %v457 = vsel %vm456, %v454, 0.0
          %458 = vadd.xlane.f32.xlu0 %v457
          %v459 = vpop.xlane.xlu0 %458
          %v460 = vsel %vm456, %v455, 0.0
          %461 = vadd.xlane.f32.xlu0 %v460
          %v462 = vpop.xlane.xlu0 %461
          %v465 = vlaneseq
          %v466 = vand.u32 %v465, 127
          %v467 = vlaneseq
          %v468 = vshrl.u32 %v467, 7
          %v469 = vsub.s32 %v466, %v468
          %v470 = vrot.slane %v459, %v469
          %v471 = vlaneseq
          %v472 = vshrl.u32 %v471, 7
          %v473 = vsub.s32 %v466, %v472
          %v474 = vrot.slane %v462, %v473
          %vm475 = vcmask 1041409
          %v476 = vsel %vm475, %v474, %v470
          %vm478 = vcmask 58368
          %v479 = vsel %vm478, %v476, -inf
          %480 = vmax.xlane.f32.xlu0 %v479
          %v481 = vpop.xlane.xlu0 %480
          %v483 = vlaneseq
          %v484 = vshrl.u32 %v483, 7
          %v485 = vsub.s32 0, %v484
          %v486 = vrot.slane %v481, %v485
          %v487 = vlaneseq
          %v488 = vshrl.u32 %v487, 7
          %v489 = vsub.s32 1, %v488
          %v490 = vrot.slane %v481, %v489
          %v493 = vsub.f32 %v459, %v486
          %v494 = vsub.f32 %v462, %v490
          %v495 = vmul.f32 %v493, 1.442695
          %v496 = vpow.pop %v495
          %v497 = vmul.f32 %v494, 1.442695
          %v498 = vpow.pop %v497
          %501 = vset.pattern.permute.xlu0 0
          %502 = vperm.xlu0 %501, %v496
          %v503 = vpop.permute.xlu0 %502
          %504 = vset.pattern.permute.xlu0 0
          %505 = vperm.xlu0 %504, %v498
          %v506 = vpop.permute.xlu0 %505
          %v507 = vlaneseq
          %v508 = vshrl.u32 %v507, 7
          %v509 = vsub.s32 %v466, %v508
          %v510 = vrot.slane %v503, %v509
          %v511 = vlaneseq
          %v512 = vshrl.u32 %v511, 7
          %v513 = vsub.s32 %v466, %v512
          %v514 = vrot.slane %v506, %v513
          %v515 = vsel %vm475, %v514, %v510
          %v517 = vsel %vm478, %v515, 0.0
          %518 = vadd.xlane.f32.xlu0 %v517
          %v519 = vpop.xlane.xlu0 %518
          %v520 = vrcp.pop %v519
          %v522 = vlaneseq
          %v523 = vshrl.u32 %v522, 7
          %v524 = vsub.s32 0, %v523
          %v525 = vrot.slane %v520, %v524
          %v526 = vlaneseq
          %v527 = vshrl.u32 %v526, 7
          %v528 = vsub.s32 1, %v527
          %v529 = vrot.slane %v520, %v528
          %v532 = vmul.f32 %v496, %v525
          %v533 = vmul.f32 %v498, %v529
          %535 = vset.pattern.permute.xlu0 0
          %536 = vperm.xlu0 %535, %v532
          %v537 = vpop.permute.xlu0 %536
          %540 = vset.pattern.permute.xlu0 0
          %541 = vperm.xlu0 %540, %v533
          %v542 = vpop.permute.xlu0 %541
          %v544 = vmul.f32 %v537, %v445
          %v545 = vmul.f32 %v542, %v446
          %v546 = vsel %vm456, %v544, 0.0
          %v547 = vrot.slane %v546, 4
          %v548 = vadd.f32 %v546, %v547
          %v549 = vrot.slane %v548, 2
          %v550 = vadd.f32 %v548, %v549
          %v551 = vrot.slane %v550, 1
          %v552 = vadd.f32 %v550, %v551
          %v553 = vsel %vm456, %v545, 0.0
          %v554 = vrot.slane %v553, 4
          %v555 = vadd.f32 %v553, %v554
          %v556 = vrot.slane %v555, 2
          %v557 = vadd.f32 %v555, %v556
          %v558 = vrot.slane %v557, 1
          %v559 = vadd.f32 %v557, %v558
          %v562 = vsel %vm475, %v559, %v552
          %vm564 = vcmask 254976
          %565 = vst.msk [vmem:[#allocation2] sm:$0x3] %vm564, %v562
          %566 = vst.msk [vmem:[#allocation3] sm:$0x3] %vm564, 0.0
        $region60: #{tpu_custom_call.1} parent=51 // pred_fallthru
          _
        %v567 = vld [vmem:[#allocation2] sm:$0x3]
        %v568 = vld [vmem:[#allocation3] sm:$0x3]
        %v569 = vpack.c.bf16 %v567, %v567
        %v570 = vld [vmem:[%s420] sm:$0xf]
        %v571 = vld [vmem:[%s420 + $0x4] sm:$0xf]
        %v572 = vld [vmem:[%s420 + $0x8] sm:$0xf]
        %v573 = vld [vmem:[%s420 + $0xc] sm:$0xf]
        %v578 = vunpack.c.l.b16 %v570
        %v579 = vunpack.c.l.b16 %v571
        %v580 = vunpack.c.l.b16 %v572
        %v581 = vunpack.c.l.b16 %v573
        %v582 = vpack.c.b16 %v579, %v578
        %v583 = vpack.c.b16 %v581, %v580
        %vm586 = vcmask 261120
        %v588 = vsel %vm586, %v569, 0
        %590 = vmatprep.subr.bf16.mxu0 0
        %591 = vmatpush1.bf16.msra.mxu0 0
        %592 = vmatprep.subr.bf16.mxu0 0
        %593 = vmatpush1.bf16.msra.mxu0 0
        %594 = vmatprep.subr.bf16.mxu0 0
        %595 = vmatpush1.bf16.msra.mxu0 0
        %596 = vmatprep.subr.bf16.mxu0 0
        %597 = vmatpush1.bf16.msra.mxu0 0
        %598 = vmatprep.subr.bf16.mxu0 0
        %599 = vmatpush1.bf16.msra.mxu0 0
        %600 = vmatprep.subr.bf16.mxu0 0
        %601 = vmatpush1.bf16.msra.mxu0 0
        %602 = vmatprep.subr.bf16.mxu0 0
        %603 = vmatpush1.bf16.msra.mxu0 %v583
        %604 = vmatprep.subr.bf16.mxu0 0
        %605 = vmatpush1.bf16.msra.mxu0 %v582
        %606 = vmatprep.subr.bf16.mxu0 0
        %607 = vmatpush2.bf16.msra.mxu0 0
        %608 = vmatprep.subr.bf16.mxu0 0
        %609 = vmatpush2.bf16.msra.mxu0 0
        %610 = vmatprep.subr.bf16.mxu0 0
        %611 = vmatpush2.bf16.msra.mxu0 0
        %612 = vmatprep.subr.bf16.mxu0 0
        %613 = vmatpush2.bf16.msra.mxu0 0
        %614 = vmatprep.subr.bf16.mxu0 0
        %615 = vmatpush2.bf16.msra.mxu0 0
        %616 = vmatprep.subr.bf16.mxu0 0
        %617 = vmatpush2.bf16.msra.mxu0 0
        %618 = vmatprep.subr.bf16.mxu0 0
        %619 = vmatpush2.bf16.msra.mxu0 0
        %620 = vmatprep.subr.bf16.mxu0 0
        %621 = vmatpush2.bf16.msra.mxu0 0
        %622 = vmatprep.mubr.bf16.mxu0 0
        %623 = vmatmul.mubr.bf16.gmra.mxu0 %v588
        %v624 = vpop.f32.mrf.mxu0
        %v625 = vadd.f32 0.0, %v624
        %v626 = vpop.f32.mrf.mxu0
        %v627 = vpop.f32.mrf.mxu0
        %v628 = vpop.f32.mrf.mxu0
        %629 = vdwg.mxu0
        %v630 = vadd.f32 %v568, %v625
        %vm631 = vcmask 254976
        %632 = vst.msk [vmem:[#allocation3] sm:$0x3] %vm631, %v630
        // Predicated region
        $region61: #{tpu_custom_call.1} parent=51 // pred_check
          %p633 = pneg %p441
        $region62: #{tpu_custom_call.1} parent=51 // pred_check_branch
          %635 = sbr.rel (%p633) target = $region64
        $region63: #{tpu_custom_call.1} parent=51 // pred_region
          %v636 = vld [vmem:[#allocation3] sm:$0x3]
          %v637 = vld [vmem:[%s424] sm:$0x1]
          %v639 = vlaneseq
          %v640 = vshrl.u32 %v639, 7
          %v641 = vsub.s32 0, %v640
          %v642 = vrot.slane %v637, %v641
          %v644 = vadd.f32 %v636, %v642
          %v645 = vpack.c.bf16 %v644, %v644
          %v646 = vld [vmem:[%s429] sm:$0xf]
          %v647 = vld [vmem:[%s429 + $0x4] sm:$0xf]
          %v648 = vld [vmem:[%s429 + $0x8] sm:$0xf]
          %v649 = vld [vmem:[%s429 + $0xc] sm:$0xf]
          %v650 = vld [vmem:[%s432] sm:$0x1]
          %v652 = vlaneseq
          %v653 = vshrl.u32 %v652, 7
          %v654 = vsub.s32 0, %v653
          %v655 = vrot.slane %v650, %v654
          %v661 = vunpack.c.l.b16 %v646
          %v662 = vunpack.c.l.b16 %v647
          %v663 = vunpack.c.l.b16 %v648
          %v664 = vunpack.c.l.b16 %v649
          %v665 = vpack.c.b16 %v662, %v661
          %v666 = vpack.c.b16 %v664, %v663
          %v670 = vsel %vm586, %v645, 0
          %672 = vmatprep.subr.bf16.mxu0 0
          %673 = vmatpush1.bf16.msra.mxu0 0
          %674 = vmatprep.subr.bf16.mxu0 0
          %675 = vmatpush1.bf16.msra.mxu0 0
          %676 = vmatprep.subr.bf16.mxu0 0
          %677 = vmatpush1.bf16.msra.mxu0 0
          %678 = vmatprep.subr.bf16.mxu0 0
          %679 = vmatpush1.bf16.msra.mxu0 0
          %680 = vmatprep.subr.bf16.mxu0 0
          %681 = vmatpush1.bf16.msra.mxu0 0
          %682 = vmatprep.subr.bf16.mxu0 0
          %683 = vmatpush1.bf16.msra.mxu0 0
          %684 = vmatprep.subr.bf16.mxu0 0
          %685 = vmatpush1.bf16.msra.mxu0 %v666
          %686 = vmatprep.subr.bf16.mxu0 0
          %687 = vmatpush1.bf16.msra.mxu0 %v665
          %688 = vmatprep.subr.bf16.mxu0 0
          %689 = vmatpush2.bf16.msra.mxu0 0
          %690 = vmatprep.subr.bf16.mxu0 0
          %691 = vmatpush2.bf16.msra.mxu0 0
          %692 = vmatprep.subr.bf16.mxu0 0
          %693 = vmatpush2.bf16.msra.mxu0 0
          %694 = vmatprep.subr.bf16.mxu0 0
          %695 = vmatpush2.bf16.msra.mxu0 0
          %696 = vmatprep.subr.bf16.mxu0 0
          %697 = vmatpush2.bf16.msra.mxu0 0
          %698 = vmatprep.subr.bf16.mxu0 0
          %699 = vmatpush2.bf16.msra.mxu0 0
          %700 = vmatprep.subr.bf16.mxu0 0
          %701 = vmatpush2.bf16.msra.mxu0 0
          %702 = vmatprep.subr.bf16.mxu0 0
          %703 = vmatpush2.bf16.msra.mxu0 0
          %704 = vmatprep.mubr.bf16.mxu0 0
          %705 = vmatmul.mubr.bf16.gmra.mxu0 %v670
          %v706 = vpop.f32.mrf.mxu0
          %v707 = vadd.f32 %v655, %v706
          %v708 = vpop.f32.mrf.mxu0
          %v709 = vpop.f32.mrf.mxu0
          %v710 = vpop.f32.mrf.mxu0
          %711 = vdwg.mxu0
          %v712 = vmul.f32 %v707, 0.5
          %v713 = vmul.f32 %v707, 0.70710677
          %v714 = verf.f32.pop %v713
          %v715 = vadd.f32 %v714, 1.0
          %v716 = vmul.f32 %v712, %v715
          %v717 = vpack.c.bf16 %v716, %v716
          %v718 = vld [vmem:[%s436] sm:$0xf]
          %v719 = vld [vmem:[%s439] sm:$0x1]
          %v721 = vlaneseq
          %v722 = vshrl.u32 %v721, 7
          %v723 = vsub.s32 0, %v722
          %v724 = vrot.slane %v719, %v723
          %vm726 = vcmask 64512
          %v728 = vsel %vm726, %v717, 0
          %vm730 = vcmask 1043456
          %v732 = vsel %vm730, %v718, 0
          %734 = vmatprep.subr.bf16.mxu0 0
          %735 = vmatpush1.bf16.msra.mxu0 0
          %736 = vmatprep.subr.bf16.mxu0 0
          %737 = vmatpush1.bf16.msra.mxu0 0
          %738 = vmatprep.subr.bf16.mxu0 0
          %739 = vmatpush1.bf16.msra.mxu0 0
          %740 = vmatprep.subr.bf16.mxu0 0
          %741 = vmatpush1.bf16.msra.mxu0 0
          %742 = vmatprep.subr.bf16.mxu0 0
          %743 = vmatpush1.bf16.msra.mxu0 0
          %744 = vmatprep.subr.bf16.mxu0 0
          %745 = vmatpush1.bf16.msra.mxu0 0
          %746 = vmatprep.subr.bf16.mxu0 0
          %747 = vmatpush1.bf16.msra.mxu0 0
          %748 = vmatprep.subr.bf16.mxu0 0
          %749 = vmatpush1.bf16.msra.mxu0 %v732
          %750 = vmatprep.subr.bf16.mxu0 0
          %751 = vmatpush2.bf16.msra.mxu0 0
          %752 = vmatprep.subr.bf16.mxu0 0
          %753 = vmatpush2.bf16.msra.mxu0 0
          %754 = vmatprep.subr.bf16.mxu0 0
          %755 = vmatpush2.bf16.msra.mxu0 0
          %756 = vmatprep.subr.bf16.mxu0 0
          %757 = vmatpush2.bf16.msra.mxu0 0
          %758 = vmatprep.subr.bf16.mxu0 0
          %759 = vmatpush2.bf16.msra.mxu0 0
          %760 = vmatprep.subr.bf16.mxu0 0
          %761 = vmatpush2.bf16.msra.mxu0 0
          %762 = vmatprep.subr.bf16.mxu0 0
          %763 = vmatpush2.bf16.msra.mxu0 0
          %764 = vmatprep.subr.bf16.mxu0 0
          %765 = vmatpush2.bf16.msra.mxu0 0
          %766 = vmatprep.mubr.bf16.mxu0 0
          %767 = vmatmul.mubr.bf16.gmra.mxu0 %v728
          %v768 = vpop.f32.mrf.mxu0
          %v769 = vadd.f32 %v724, %v768
          %v770 = vpop.f32.mrf.mxu0
          %v771 = vpop.f32.mrf.mxu0
          %v772 = vpop.f32.mrf.mxu0
          %773 = vdwg.mxu0
          %774 = vst [vmem:[%s408] sm:$0x3] %v769
        $region64: #{tpu_custom_call.1} parent=51 // pred_fallthru
          _
        %s775 = sand.u32 %s248, 1
        %s776 = scalar_lea.sflag [#allocation6], %s775
        %s777 = sand.u32 %s248, 1
        %s778 = smul.addr %s777, 2
        %s779 = scalar_lea.vmem [#allocation7], %s778
        // Predicated region
        $region65: #{tpu_custom_call.1} parent=51 // pred_check
          %p780 = pneg %p258
        $region66: #{tpu_custom_call.1} parent=51 // pred_check_branch
          %782 = sbr.rel (%p780) target = $region68
        $region67: #{tpu_custom_call.1} parent=51 // pred_region
          %s784 = ssub.s32 32, 32
          %785 = vsyncadd %s776, %s784
          %s786 = smul.addr %s27, 32
          %s787 = scalar_lea.hbm %s8, %s786
          %s789 = sshll.u32 %s779, 4
          %s790 = int_to_ptr.vmem [resolvable:$true] %s789
          %792 = dma.vmem_to_hbm [thread:$0]  %s790, 32, %s787, %s776
        $region68: #{tpu_custom_call.1} parent=51 // pred_fallthru
          _
      $region52: #{tpu_custom_call.1} parent=5 // pred_fallthru
        _
      %p793 = scmp.le.s32.totalorder 2, %s18
      // Predicated region
      $region69: #{tpu_custom_call.1} parent=5 // pred_check
        %p794 = pneg %p793
      $region70: #{tpu_custom_call.1} parent=5 // pred_check_branch
        %796 = sbr.rel (%p794) target = $region72
      $region71: #{tpu_custom_call.1} parent=5 // pred_region
        %s797 = ssub.s32 %s18, 2
        // Predicated region
        $region73: #{tpu_custom_call.1} parent=71 // pred_check
          %p798 = pneg %p264
        $region74: #{tpu_custom_call.1} parent=71 // pred_check_branch
          %800 = sbr.rel (%p798) target = $region76
        $region75: #{tpu_custom_call.1} parent=71 // pred_region
          %s801 = sand.u32 %s249, 1
          %s802 = scalar_lea.sflag [#allocation6], %s801
          %s803 = sand.u32 %s249, 1
          %s804 = smul.addr %s803, 2
          %s805 = scalar_lea.vmem [#allocation7], %s804
          %806 = dma.done %s802, 32
        $region76: #{tpu_custom_call.1} parent=71 // pred_fallthru
          _
      $region72: #{tpu_custom_call.1} parent=5 // pred_fallthru
        _
    $region6: #{tpu_custom_call.1} parent=1 // loop_footer
      %s22 = sadd.s32 1, %s18
    $region7: #{tpu_custom_call.1} parent=1 // loop_footer_branch
      %17 = sbr.rel target = $region3
    $region8: #{tpu_custom_call.1} parent=1 // loop_exit
      _
    %807 = vsyncpa [#allocation5], 1
    %s808 = scalar_lea.sflag [#allocation5], 1
    %809 = vsyncpa %s808, 1
    %810 = vsyncpa [#allocation6], 1
    %s811 = scalar_lea.sflag [#allocation6], 1
    %812 = vsyncpa %s811, 1

</llo_original>
